<compile_context>
chip_gen: v7x
topology: tpu7x:2x2x1
jax: 0.10.0
libtpu: 0.0.40
codegen_flags: <defaults>
</compile_context>

<pallas_src>
import functools

import jax
import jax.numpy as jnp
from jax import lax
from jax.experimental import pallas as pl
from jax.experimental.pallas import tpu as pltpu
import numpy as np


def _vmem_budget_bytes():
    """Generation-aware VMEM budget: ~7/8 of physical, capped at 112 MiB.

    v7x (64 MiB physical) -> 56 MiB; v5e/v6e (128 MiB physical) -> 112 MiB.
    """
    cap = 128 * 1024 * 1024
    try:
        cap = int(pltpu.get_tpu_info().vmem_capacity_bytes)
    except Exception:
        pass
    return min(cap - cap // 8, 112 * 1024 * 1024)


def _layer_norm_f32(x, gamma, beta, eps):
    xf = x.astype(jnp.float32)
    mean = jnp.mean(xf, axis=-1, keepdims=True)
    cen = xf - mean
    var = jnp.mean(cen * cen, axis=-1, keepdims=True)
    return cen * lax.rsqrt(var + eps) * gamma + beta


# --------------------------------------------------------------------------
# Stage 1: per-batch K/V projection, written head-major with K pre-transposed.
# --------------------------------------------------------------------------
def _kv_project_kernel(k_ref, v_ref, wk_ref, bk_ref, wv_ref, bv_ref,
                       gamma_ref, beta_ref, kt_ref, vh_ref,
                       *, n_head, d_head, pre_layer_norm, eps):
    in_dtype = k_ref.dtype
    k_in = k_ref[...]
    v_in = v_ref[...]
    if pre_layer_norm:
        gamma = gamma_ref[...].astype(jnp.float32)
        beta = beta_ref[...].astype(jnp.float32)
        k_in = _layer_norm_f32(k_in, gamma, beta, eps).astype(in_dtype)
        v_in = _layer_norm_f32(v_in, gamma, beta, eps).astype(in_dtype)

    k_proj = (jnp.dot(k_in, wk_ref[...], preferred_element_type=jnp.float32)
              + bk_ref[...].astype(jnp.float32)).astype(in_dtype)   # (Lk, H*Dh)
    v_proj = (jnp.dot(v_in, wv_ref[...], preferred_element_type=jnp.float32)
              + bv_ref[...].astype(jnp.float32)).astype(in_dtype)   # (Lk, H*Dh)

    # Done once per batch -> the head split + K transpose are amortized over
    # every q tile of stage 2.
    for h in range(n_head):
        lo = h * d_head
        kt_ref[h] = k_proj[:, lo:lo + d_head].T     # (Dh, Lk) pre-transposed
        vh_ref[h] = v_proj[:, lo:lo + d_head]       # (Lk, Dh)


# --------------------------------------------------------------------------
# Stage 2: attention over q tiles (both grid axes parallel).
# --------------------------------------------------------------------------
def _attn_kernel(q_ref, kt_ref, vh_ref, wq_ref, bq_ref, wfc_ref, bfc_ref,
                 gamma_ref, beta_ref, out_ref, attn_ref,
                 *, n_head, d_head, pre_layer_norm, eps, scale, approx_recip):
    in_dtype = q_ref.dtype
    gamma = gamma_ref[...].astype(jnp.float32)
    beta = beta_ref[...].astype(jnp.float32)

    q_in = q_ref[...]
    if pre_layer_norm:
        q_in = _layer_norm_f32(q_in, gamma, beta, eps).astype(in_dtype)

    # Q projection; the 1/sqrt(d_head) score scale is folded in here once.
    q_proj = jnp.dot(q_in, wq_ref[...], preferred_element_type=jnp.float32)
    q_proj = ((q_proj + bq_ref[...].astype(jnp.float32)) * scale).astype(in_dtype)

    head_outs = []
    for h in range(n_head):                         # static unroll over heads
        lo = h * d_head
        qh = q_proj[:, lo:lo + d_head]              # (tq, Dh)
        # K stored pre-transposed head-major: plain (tq,Dh)@(Dh,Lk) MXU matmul,
        # no per-tile transposed dot_general.
        scores = jnp.dot(qh, kt_ref[h], preferred_element_type=jnp.float32)
        # TODO(synk): attention mask (masked_fill -inf) not implemented.
        m = jnp.max(scores, axis=-1, keepdims=True)
        e = jnp.exp(scores - m)
        s = jnp.sum(e, axis=-1, keepdims=True)
        # EUP reciprocal (free slot) + VPU multiply instead of a full divide.
        probs = e * pl.reciprocal(s, approx=approx_recip)   # (tq, Lk) f32
        attn_ref[h] = probs.astype(attn_ref.dtype)
        av = jnp.dot(probs.astype(in_dtype), vh_ref[h],
                     preferred_element_type=jnp.float32)    # (tq, Dh)
        # Narrow immediately: only in_dtype head outputs (== one (tq,d_model)
        # tile in total) stay live; f32 scores/probs/av die inside the iter.
        head_outs.append(av.astype(in_dtype))

    # One layout concat feeding a single full-K FC matmul on the MXU.
    attn_vec = jnp.concatenate(head_outs, axis=-1)          # (tq, d_model)
    out = jnp.dot(attn_vec, wfc_ref[...], preferred_element_type=jnp.float32)
    out = out + bfc_ref[...].astype(jnp.float32)
    # Dropout = identity (inference).
    out = out + q_ref[...].astype(jnp.float32)              # residual, upcast on the fly
    if not pre_layer_norm:
        out = _layer_norm_f32(out, gamma, beta, eps)
    out_ref[...] = out.astype(out_ref.dtype)


def multi_head_attention(q, k, v, params, *, n_head, pre_layer_norm=False,
                         eps=1e-5, tq=None, attn_layout="bqkn",
                         approx_recip=True):
    """q: (B, Lq, d_model), k/v: (B, Lk, d_model).

    params = (wq, bq, wk, bk, wv, bv, wfc, bfc, gamma, beta); weights stored
    (in_features, out_features).  Returns (output (B, Lq, d_model), attn_prob).
    attn_layout: "bqkn" (module-compatible, default) or "bhqk" (kernel's
    lane-dense layout; skips the wrapper-side transpose / HBM round trip).
    """
    wq, bq, wk, bk, wv, bv, wfc, bfc, gamma, beta = params
    B, Lq, d_model = q.shape
    Lk = k.shape[1]
    assert d_model % n_head == 0
    assert attn_layout in ("bqkn", "bhqk")
    d_head = d_model // n_head
    scale = float(d_head) ** (-0.5)
    dtype = q.dtype
    bs = jnp.dtype(dtype).itemsize
    budget = _vmem_budget_bytes()

    # ---- Stage 1: per-batch K/V projection (once per batch). -------------
    kt, vh = pl.pallas_call(
        functools.partial(_kv_project_kernel, n_head=n_head, d_head=d_head,
                          pre_layer_norm=pre_layer_norm, eps=eps),
        out_shape=(jax.ShapeDtypeStruct((B, n_head, d_head, Lk), dtype),
                   jax.ShapeDtypeStruct((B, n_head, Lk, d_head), dtype)),
        grid_spec=pltpu.PrefetchScalarGridSpec(
            num_scalar_prefetch=0,
            grid=(B,),
            in_specs=[
                pl.BlockSpec((None, Lk, d_model), lambda b: (b, 0, 0)),   # k
                pl.BlockSpec((None, Lk, d_model), lambda b: (b, 0, 0)),   # v
                pl.BlockSpec((d_model, d_model), lambda b: (0, 0)),       # Wk
                pl.BlockSpec((1, d_model), lambda b: (0, 0)),             # bk
                pl.BlockSpec((d_model, d_model), lambda b: (0, 0)),       # Wv
                pl.BlockSpec((1, d_model), lambda b: (0, 0)),             # bv
                pl.BlockSpec((1, d_model), lambda b: (0, 0)),             # gamma
                pl.BlockSpec((1, d_model), lambda b: (0, 0)),             # beta
            ],
            out_specs=[
                pl.BlockSpec((None, n_head, d_head, Lk), lambda b: (b, 0, 0, 0)),
                pl.BlockSpec((None, n_head, Lk, d_head), lambda b: (b, 0, 0, 0)),
            ],
        ),
        compiler_params=pltpu.CompilerParams(
            dimension_semantics=("parallel",),
            vmem_limit_bytes=budget),
    )(k, v, wk, bk, wv, bv, gamma, beta)

    # ---- q tile size: largest aligned divisor of Lq (<=256) whose per-step
    # working set — including the 2*H*tq*Lk attn-prob writeback block — fits
    # the generation-aware VMEM budget (drops tq on v7x automatically).
    def vmem_estimate(t):
        fixed = (4 * d_model * d_model           # Wq, Wfc (double-buffered)
                 + 4 * Lk * d_model              # Kt, Vh (double-buffered)
                 + 12 * d_model) * bs            # biases + LN params
        per_tile = (4 * t * d_model * bs         # q in + out (double-buffered)
                    + 2 * n_head * t * Lk * bs   # attn probs out (double-buffered)
                    + t * d_model * bs           # concatenated attn_vec
                    + 8 * t * Lk)                # live f32 scores/probs temporaries
        return fixed + per_tile

    if tq is None:
        cands = [t for t in range(1, min(Lq, 256) + 1)
                 if Lq % t == 0 and (t % 8 == 0 or t == Lq)]
        if not cands:
            cands = [Lq]
        tq = cands[0]
        for t in reversed(cands):
            if vmem_estimate(t) <= budget:
                tq = t
                break
    assert Lq % tq == 0
    nq = Lq // tq

    # ---- Stage 2: attention. Both axes parallel (no scratch carry). -------
    const = lambda b, qi: (0, 0)
    out, attn = pl.pallas_call(
        functools.partial(_attn_kernel, n_head=n_head, d_head=d_head,
                          pre_layer_norm=pre_layer_norm, eps=eps, scale=scale,
                          approx_recip=approx_recip),
        out_shape=(jax.ShapeDtypeStruct((B, Lq, d_model), dtype),
                   jax.ShapeDtypeStruct((B, n_head, Lq, Lk), dtype)),
        grid_spec=pltpu.PrefetchScalarGridSpec(
            num_scalar_prefetch=0,
            grid=(B, nq),
            in_specs=[
                pl.BlockSpec((None, tq, d_model), lambda b, qi: (b, qi, 0)),          # q rows
                pl.BlockSpec((None, n_head, d_head, Lk), lambda b, qi: (b, 0, 0, 0)), # Kt
                pl.BlockSpec((None, n_head, Lk, d_head), lambda b, qi: (b, 0, 0, 0)), # Vh
                pl.BlockSpec((d_model, d_model), const),   # Wq
                pl.BlockSpec((1, d_model), const),         # bq
                pl.BlockSpec((d_model, d_model), const),   # Wfc
                pl.BlockSpec((1, d_model), const),         # bfc
                pl.BlockSpec((1, d_model), const),         # LN gamma
                pl.BlockSpec((1, d_model), const),         # LN beta
            ],
            out_specs=[
                pl.BlockSpec((None, tq, d_model), lambda b, qi: (b, qi, 0)),
                pl.BlockSpec((None, n_head, tq, Lk), lambda b, qi: (b, 0, qi, 0)),
            ],
        ),
        compiler_params=pltpu.CompilerParams(
            dimension_semantics=("parallel", "parallel"),
            vmem_limit_bytes=budget),
    )(q, kt, vh, wq, bq, wfc, bfc, gamma, beta)

    if attn_layout == "bqkn":
        # Module-compatible (B, Lq, Lk, H); layout plumbing only.
        attn = jnp.transpose(attn, (0, 2, 3, 1))
    return out, attn


def _reference(q, k, v, params, n_head, pre_layer_norm, eps=1e-5):
    wq, bq, wk, bk, wv, bv, wfc, bfc, gamma, beta = params
    B, Lq, d_model = q.shape
    Lk = k.shape[1]
    d_head = d_model // n_head
    scale = d_head ** (-0.5)

    def ln(x):
        m = jnp.mean(x, axis=-1, keepdims=True)
        var = jnp.mean((x - m) ** 2, axis=-1, keepdims=True)
        return (x - m) / jnp.sqrt(var + eps) * gamma[0] + beta[0]

    residual = q
    if pre_layer_norm:
        q, k, v = ln(q), ln(k), ln(v)
    qp = (q @ wq + bq[0]).reshape(B, Lq, n_head, d_head)
    kp = (k @ wk + bk[0]).reshape(B, Lk, n_head, d_head)
    vp = (v @ wv + bv[0]).reshape(B, Lk, n_head, d_head)
    score = jnp.einsum('bqnd,bknd->bqkn', qp, kp) * scale
    prob = jax.nn.softmax(score, axis=2)
    av = jnp.einsum('bqkn,bknd->bqnd', prob, vp).reshape(B, Lq, n_head * d_head)
    out = av @ wfc + bfc[0]
    if pre_layer_norm:
        out = residual + out
    else:
        out = ln(residual + out)
    return out, prob


if __name__ == "__main__":
    # Small shapes consistent with the module's forward.
    B, Lq, Lk, d_model, n_head = 2, 8, 8, 32, 4
    d_head = d_model // n_head
    dropout = 0.1  # inference-mode identity

    key = jax.random.PRNGKey(0)
    ks = jax.random.split(key, 12)

    q = jax.random.normal(ks[0], (B, Lq, d_model), jnp.float32)
    k = jax.random.normal(ks[1], (B, Lk, d_model), jnp.float32)
    v = jax.random.normal(ks[2], (B, Lk, d_model), jnp.float32)

    std_qkv = np.sqrt(2.0 / (d_model + d_head))
    wq = jax.random.normal(ks[3], (d_model, n_head * d_head), jnp.float32) * std_qkv
    wk = jax.random.normal(ks[4], (d_model, n_head * d_head), jnp.float32) * std_qkv
    wv = jax.random.normal(ks[5], (d_model, n_head * d_head), jnp.float32) * std_qkv
    wfc = jax.random.normal(ks[6], (n_head * d_head, d_model), jnp.float32) \
        * np.sqrt(2.0 / (n_head * d_head))
    bq = jax.random.normal(ks[7], (1, n_head * d_head), jnp.float32) * 0.1
    bk = jax.random.normal(ks[8], (1, n_head * d_head), jnp.float32) * 0.1
    bv = jax.random.normal(ks[9], (1, n_head * d_head), jnp.float32) * 0.1
    bfc = jax.random.normal(ks[10], (1, d_model), jnp.float32) * 0.1
    gamma = 1.0 + 0.1 * jax.random.normal(ks[11], (1, d_model), jnp.float32)
    beta = jnp.zeros((1, d_model), jnp.float32)
    params = (wq, bq, wk, bk, wv, bv, wfc, bfc, gamma, beta)

    for pre_ln in (False, True):
        ref_out, ref_attn = _reference(q, k, v, params, n_head, pre_ln)
        for approx in (False, True):
            out, attn = multi_head_attention(q, k, v, params, n_head=n_head,
                                             pre_layer_norm=pre_ln,
                                             approx_recip=approx)
            out = jax.block_until_ready(out)
            attn = jax.block_until_ready(attn)
            # The exact-reciprocal path validates the math tightly; the approx
            # (EUP vrcp) path is held to a looser bound that covers its
            # small relative error in the softmax denominator.
            tol = 2e-2 if approx else 2e-5
            np.testing.assert_allclose(np.asarray(out), np.asarray(ref_out),
                                       rtol=tol, atol=tol)
            np.testing.assert_allclose(np.asarray(attn), np.asarray(ref_attn),
                                       rtol=tol, atol=tol)

    print("KERNEL_OK")
</pallas_src>

<mosaic_0001>
module attributes {stable_mosaic.version = 11 : i64} {
  func.func @_kv_project_kernel(%arg0: i32, %arg1: memref<1x8x32xf32, #tpu.memory_space<vmem>>, %arg2: memref<1x8x32xf32, #tpu.memory_space<vmem>>, %arg3: memref<32x32xf32, #tpu.memory_space<vmem>>, %arg4: memref<1x32xf32, #tpu.memory_space<vmem>>, %arg5: memref<32x32xf32, #tpu.memory_space<vmem>>, %arg6: memref<1x32xf32, #tpu.memory_space<vmem>>, %arg7: memref<1x32xf32, #tpu.memory_space<vmem>>, %arg8: memref<1x32xf32, #tpu.memory_space<vmem>>, %arg9: memref<1x4x8x8xf32, #tpu.memory_space<vmem>>, %arg10: memref<1x4x8x8xf32, #tpu.memory_space<vmem>>) attributes {dimension_semantics = [#tpu.dimension_semantics<parallel>], iteration_bounds = array<i64: 2>, scalar_prefetch = 0 : i64, scratch_operands = 0 : i64, tpu.core_type = #tpu.core_type<tc>, window_params = [{transform_indices = @transform_0, window_bounds = array<i64: 1, 8, 32>}, {transform_indices = @transform_1, window_bounds = array<i64: 1, 8, 32>}, {pipeline_mode = #tpu.pipeline_mode<synchronous>, transform_indices = @transform_2, window_bounds = array<i64: 32, 32>}, {pipeline_mode = #tpu.pipeline_mode<synchronous>, transform_indices = @transform_3, window_bounds = array<i64: 1, 32>}, {pipeline_mode = #tpu.pipeline_mode<synchronous>, transform_indices = @transform_4, window_bounds = array<i64: 32, 32>}, {pipeline_mode = #tpu.pipeline_mode<synchronous>, transform_indices = @transform_5, window_bounds = array<i64: 1, 32>}, {pipeline_mode = #tpu.pipeline_mode<synchronous>, transform_indices = @transform_6, window_bounds = array<i64: 1, 32>}, {pipeline_mode = #tpu.pipeline_mode<synchronous>, transform_indices = @transform_7, window_bounds = array<i64: 1, 32>}, {transform_indices = @transform_8, window_bounds = array<i64: 1, 4, 8, 8>}, {transform_indices = @transform_9, window_bounds = array<i64: 1, 4, 8, 8>}]} {
    %c0 = arith.constant 0 : index
    %c0_0 = arith.constant 0 : index
    %c0_1 = arith.constant 0 : index
    %0 = vector.load %arg1[%c0, %c0_0, %c0_1] : memref<1x8x32xf32, #tpu.memory_space<vmem>>, vector<1x8x32xf32>
    %1 = vector.shape_cast %0 : vector<1x8x32xf32> to vector<8x32xf32>
    %c0_2 = arith.constant 0 : index
    %c0_3 = arith.constant 0 : index
    %c0_4 = arith.constant 0 : index
    %2 = vector.load %arg2[%c0_2, %c0_3, %c0_4] : memref<1x8x32xf32, #tpu.memory_space<vmem>>, vector<1x8x32xf32>
    %3 = vector.shape_cast %2 : vector<1x8x32xf32> to vector<8x32xf32>
    %c0_5 = arith.constant 0 : index
    %c0_6 = arith.constant 0 : index
    %4 = vector.load %arg3[%c0_5, %c0_6] : memref<32x32xf32, #tpu.memory_space<vmem>>, vector<32x32xf32>
    %cst = arith.constant dense<0.000000e+00> : vector<8x32xf32>
    %5 = tpu.matmul %1, %4, %cst {dimension_numbers = #tpu.dot_dimension_numbers<[1], [0], [0], [1], [0, 0, 1, 1], [], []>} : vector<8x32xf32>, vector<32x32xf32>, vector<8x32xf32> -> vector<8x32xf32>
    %c0_7 = arith.constant 0 : index
    %c0_8 = arith.constant 0 : index
    %6 = vector.load %arg4[%c0_7, %c0_8] : memref<1x32xf32, #tpu.memory_space<vmem>>, vector<1x32xf32>
    %7 = vector.broadcast %6 : vector<1x32xf32> to vector<8x32xf32>
    %8 = arith.addf %5, %7 : vector<8x32xf32>
    %c0_9 = arith.constant 0 : index
    %c0_10 = arith.constant 0 : index
    %9 = vector.load %arg5[%c0_9, %c0_10] : memref<32x32xf32, #tpu.memory_space<vmem>>, vector<32x32xf32>
    %cst_11 = arith.constant dense<0.000000e+00> : vector<8x32xf32>
    %10 = tpu.matmul %3, %9, %cst_11 {dimension_numbers = #tpu.dot_dimension_numbers<[1], [0], [0], [1], [0, 0, 1, 1], [], []>} : vector<8x32xf32>, vector<32x32xf32>, vector<8x32xf32> -> vector<8x32xf32>
    %c0_12 = arith.constant 0 : index
    %c0_13 = arith.constant 0 : index
    %11 = vector.load %arg6[%c0_12, %c0_13] : memref<1x32xf32, #tpu.memory_space<vmem>>, vector<1x32xf32>
    %12 = vector.broadcast %11 : vector<1x32xf32> to vector<8x32xf32>
    %13 = arith.addf %10, %12 : vector<8x32xf32>
    %14 = vector.extract_strided_slice %8 {offsets = [0, 0], sizes = [8, 8], strides = [1, 1]} : vector<8x32xf32> to vector<8x8xf32>
    %15 = tpu.transpose %14, [1, 0] : vector<8x8xf32> -> vector<8x8xf32>
    %c0_14 = arith.constant 0 : index
    %c0_15 = arith.constant 0 : index
    %c0_16 = arith.constant 0 : index
    %c0_17 = arith.constant 0 : index
    %16 = vector.load %arg9[%c0_14, %c0_15, %c0_16, %c0_17] : memref<1x4x8x8xf32, #tpu.memory_space<vmem>>, vector<1x1x8x8xf32>
    %17 = vector.shape_cast %16 : vector<1x1x8x8xf32> to vector<8x8xf32>
    %18 = vector.shape_cast %15 : vector<8x8xf32> to vector<1x1x8x8xf32>
    tpu.vector_store %arg9[%c0_14, %c0_15, %c0_16, %c0_17], %18 {strides = array<i32>} : memref<1x4x8x8xf32, #tpu.memory_space<vmem>>, vector<1x1x8x8xf32>,
    %19 = vector.extract_strided_slice %13 {offsets = [0, 0], sizes = [8, 8], strides = [1, 1]} : vector<8x32xf32> to vector<8x8xf32>
    %c0_18 = arith.constant 0 : index
    %c0_19 = arith.constant 0 : index
    %c0_20 = arith.constant 0 : index
    %c0_21 = arith.constant 0 : index
    %20 = vector.load %arg10[%c0_18, %c0_19, %c0_20, %c0_21] : memref<1x4x8x8xf32, #tpu.memory_space<vmem>>, vector<1x1x8x8xf32>
    %21 = vector.shape_cast %20 : vector<1x1x8x8xf32> to vector<8x8xf32>
    %22 = vector.shape_cast %19 : vector<8x8xf32> to vector<1x1x8x8xf32>
    tpu.vector_store %arg10[%c0_18, %c0_19, %c0_20, %c0_21], %22 {strides = array<i32>} : memref<1x4x8x8xf32, #tpu.memory_space<vmem>>, vector<1x1x8x8xf32>,
    %23 = vector.extract_strided_slice %8 {offsets = [0, 8], sizes = [8, 8], strides = [1, 1]} : vector<8x32xf32> to vector<8x8xf32>
    %24 = tpu.transpose %23, [1, 0] : vector<8x8xf32> -> vector<8x8xf32>
    %c0_22 = arith.constant 0 : index
    %c1 = arith.constant 1 : index
    %c0_23 = arith.constant 0 : index
    %c0_24 = arith.constant 0 : index
    %25 = vector.load %arg9[%c0_22, %c1, %c0_23, %c0_24] : memref<1x4x8x8xf32, #tpu.memory_space<vmem>>, vector<1x1x8x8xf32>
    %26 = vector.shape_cast %25 : vector<1x1x8x8xf32> to vector<8x8xf32>
    %27 = vector.shape_cast %24 : vector<8x8xf32> to vector<1x1x8x8xf32>
    tpu.vector_store %arg9[%c0_22, %c1, %c0_23, %c0_24], %27 {strides = array<i32>} : memref<1x4x8x8xf32, #tpu.memory_space<vmem>>, vector<1x1x8x8xf32>,
    %28 = vector.extract_strided_slice %13 {offsets = [0, 8], sizes = [8, 8], strides = [1, 1]} : vector<8x32xf32> to vector<8x8xf32>
    %c0_25 = arith.constant 0 : index
    %c1_26 = arith.constant 1 : index
    %c0_27 = arith.constant 0 : index
    %c0_28 = arith.constant 0 : index
    %29 = vector.load %arg10[%c0_25, %c1_26, %c0_27, %c0_28] : memref<1x4x8x8xf32, #tpu.memory_space<vmem>>, vector<1x1x8x8xf32>
    %30 = vector.shape_cast %29 : vector<1x1x8x8xf32> to vector<8x8xf32>
    %31 = vector.shape_cast %28 : vector<8x8xf32> to vector<1x1x8x8xf32>
    tpu.vector_store %arg10[%c0_25, %c1_26, %c0_27, %c0_28], %31 {strides = array<i32>} : memref<1x4x8x8xf32, #tpu.memory_space<vmem>>, vector<1x1x8x8xf32>,
    %32 = vector.extract_strided_slice %8 {offsets = [0, 16], sizes = [8, 8], strides = [1, 1]} : vector<8x32xf32> to vector<8x8xf32>
    %33 = tpu.transpose %32, [1, 0] : vector<8x8xf32> -> vector<8x8xf32>
    %c0_29 = arith.constant 0 : index
    %c2 = arith.constant 2 : index
    %c0_30 = arith.constant 0 : index
    %c0_31 = arith.constant 0 : index
    %34 = vector.load %arg9[%c0_29, %c2, %c0_30, %c0_31] : memref<1x4x8x8xf32, #tpu.memory_space<vmem>>, vector<1x1x8x8xf32>
    %35 = vector.shape_cast %34 : vector<1x1x8x8xf32> to vector<8x8xf32>
    %36 = vector.shape_cast %33 : vector<8x8xf32> to vector<1x1x8x8xf32>
    tpu.vector_store %arg9[%c0_29, %c2, %c0_30, %c0_31], %36 {strides = array<i32>} : memref<1x4x8x8xf32, #tpu.memory_space<vmem>>, vector<1x1x8x8xf32>,
    %37 = vector.extract_strided_slice %13 {offsets = [0, 16], sizes = [8, 8], strides = [1, 1]} : vector<8x32xf32> to vector<8x8xf32>
    %c0_32 = arith.constant 0 : index
    %c2_33 = arith.constant 2 : index
    %c0_34 = arith.constant 0 : index
    %c0_35 = arith.constant 0 : index
    %38 = vector.load %arg10[%c0_32, %c2_33, %c0_34, %c0_35] : memref<1x4x8x8xf32, #tpu.memory_space<vmem>>, vector<1x1x8x8xf32>
    %39 = vector.shape_cast %38 : vector<1x1x8x8xf32> to vector<8x8xf32>
    %40 = vector.shape_cast %37 : vector<8x8xf32> to vector<1x1x8x8xf32>
    tpu.vector_store %arg10[%c0_32, %c2_33, %c0_34, %c0_35], %40 {strides = array<i32>} : memref<1x4x8x8xf32, #tpu.memory_space<vmem>>, vector<1x1x8x8xf32>,
    %41 = vector.extract_strided_slice %8 {offsets = [0, 24], sizes = [8, 8], strides = [1, 1]} : vector<8x32xf32> to vector<8x8xf32>
    %42 = tpu.transpose %41, [1, 0] : vector<8x8xf32> -> vector<8x8xf32>
    %c0_36 = arith.constant 0 : index
    %c3 = arith.constant 3 : index
    %c0_37 = arith.constant 0 : index
    %c0_38 = arith.constant 0 : index
    %43 = vector.load %arg9[%c0_36, %c3, %c0_37, %c0_38] : memref<1x4x8x8xf32, #tpu.memory_space<vmem>>, vector<1x1x8x8xf32>
    %44 = vector.shape_cast %43 : vector<1x1x8x8xf32> to vector<8x8xf32>
    %45 = vector.shape_cast %42 : vector<8x8xf32> to vector<1x1x8x8xf32>
    tpu.vector_store %arg9[%c0_36, %c3, %c0_37, %c0_38], %45 {strides = array<i32>} : memref<1x4x8x8xf32, #tpu.memory_space<vmem>>, vector<1x1x8x8xf32>,
    %46 = vector.extract_strided_slice %13 {offsets = [0, 24], sizes = [8, 8], strides = [1, 1]} : vector<8x32xf32> to vector<8x8xf32>
    %c0_39 = arith.constant 0 : index
    %c3_40 = arith.constant 3 : index
    %c0_41 = arith.constant 0 : index
    %c0_42 = arith.constant 0 : index
    %47 = vector.load %arg10[%c0_39, %c3_40, %c0_41, %c0_42] : memref<1x4x8x8xf32, #tpu.memory_space<vmem>>, vector<1x1x8x8xf32>
    %48 = vector.shape_cast %47 : vector<1x1x8x8xf32> to vector<8x8xf32>
    %49 = vector.shape_cast %46 : vector<8x8xf32> to vector<1x1x8x8xf32>
    tpu.vector_store %arg10[%c0_39, %c3_40, %c0_41, %c0_42], %49 {strides = array<i32>} : memref<1x4x8x8xf32, #tpu.memory_space<vmem>>, vector<1x1x8x8xf32>,
    return
  }
  func.func @transform_0(%arg0: i32) -> (i32, i32, i32) {
    %c0_i32 = arith.constant 0 : i32
    %c0_i32_0 = arith.constant 0 : i32
    %c0_i32_1 = arith.constant 0 : i32
    return %arg0, %c0_i32, %c0_i32_0 : i32, i32, i32
  }
  func.func @transform_1(%arg0: i32) -> (i32, i32, i32) {
    %c0_i32 = arith.constant 0 : i32
    %c0_i32_0 = arith.constant 0 : i32
    %c0_i32_1 = arith.constant 0 : i32
    return %arg0, %c0_i32, %c0_i32_0 : i32, i32, i32
  }
  func.func @transform_2(%arg0: i32) -> (i32, i32) {
    %c0_i32 = arith.constant 0 : i32
    %c0_i32_0 = arith.constant 0 : i32
    %c0_i32_1 = arith.constant 0 : i32
    return %c0_i32, %c0_i32_0 : i32, i32
  }
  func.func @transform_3(%arg0: i32) -> (i32, i32) {
    %c0_i32 = arith.constant 0 : i32
    %c0_i32_0 = arith.constant 0 : i32
    %c0_i32_1 = arith.constant 0 : i32
    return %c0_i32, %c0_i32_0 : i32, i32
  }
  func.func @transform_4(%arg0: i32) -> (i32, i32) {
    %c0_i32 = arith.constant 0 : i32
    %c0_i32_0 = arith.constant 0 : i32
    %c0_i32_1 = arith.constant 0 : i32
    return %c0_i32, %c0_i32_0 : i32, i32
  }
  func.func @transform_5(%arg0: i32) -> (i32, i32) {
    %c0_i32 = arith.constant 0 : i32
    %c0_i32_0 = arith.constant 0 : i32
    %c0_i32_1 = arith.constant 0 : i32
    return %c0_i32, %c0_i32_0 : i32, i32
  }
  func.func @transform_6(%arg0: i32) -> (i32, i32) {
    %c0_i32 = arith.constant 0 : i32
    %c0_i32_0 = arith.constant 0 : i32
    %c0_i32_1 = arith.constant 0 : i32
    return %c0_i32, %c0_i32_0 : i32, i32
  }
  func.func @transform_7(%arg0: i32) -> (i32, i32) {
    %c0_i32 = arith.constant 0 : i32
    %c0_i32_0 = arith.constant 0 : i32
    %c0_i32_1 = arith.constant 0 : i32
    return %c0_i32, %c0_i32_0 : i32, i32
  }
  func.func @transform_8(%arg0: i32) -> (i32, i32, i32, i32) {
    %c0_i32 = arith.constant 0 : i32
    %c0_i32_0 = arith.constant 0 : i32
    %c0_i32_1 = arith.constant 0 : i32
    %c0_i32_2 = arith.constant 0 : i32
    return %arg0, %c0_i32, %c0_i32_0, %c0_i32_1 : i32, i32, i32, i32
  }
  func.func @transform_9(%arg0: i32) -> (i32, i32, i32, i32) {
    %c0_i32 = arith.constant 0 : i32
    %c0_i32_0 = arith.constant 0 : i32
    %c0_i32_1 = arith.constant 0 : i32
    %c0_i32_2 = arith.constant 0 : i32
    return %arg0, %c0_i32, %c0_i32_0, %c0_i32_1 : i32, i32, i32, i32
  }
}

</mosaic_0001>

<llo_original>
// kernel: tpu_custom_call.1
$region0: #{tpu_custom_call.1}
  #allocation0 [shape = 'u32[]', space=smem, size = 0x4, offset = 0x4, fixed_abs, tag = 'smem constant byte address 0x4 - core index']
  #allocation1 [shape = 'u32[144,128]{1,0:T(1,128)}', space=vmem, size = 0x12000, scoped, tag = 'internal scratch']
  %s0 = inlined_call_operand.hbm [shape: f32[2,8,32], index: 0, kind: input, shape index: {}]
  %s1 = inlined_call_operand.hbm [shape: f32[2,8,32], index: 1, kind: input, shape index: {}]
  %s2 = inlined_call_operand.hbm [shape: f32[32,32], index: 2, kind: input, shape index: {}]
  %s3 = inlined_call_operand.hbm [shape: f32[1,32], index: 3, kind: input, shape index: {}]
  %s4 = inlined_call_operand.hbm [shape: f32[32,32], index: 4, kind: input, shape index: {}]
  %s5 = inlined_call_operand.hbm [shape: f32[1,32], index: 5, kind: input, shape index: {}]
  %s6 = inlined_call_operand.hbm [shape: f32[1,32], index: 6, kind: input, shape index: {}]
  %s7 = inlined_call_operand.hbm [shape: f32[1,32], index: 7, kind: input, shape index: {}]
  %s8 = inlined_call_operand.hbm [shape: f32[2,4,8,8], index: 8, kind: output, shape index: {0}]
  %s9 = inlined_call_operand.hbm [shape: f32[2,4,8,8], index: 9, kind: output, shape index: {1}]
  %10 = xla_tuple %s8, %s9
  %s11 = sld [smem:[#allocation0]]
  $region105: #{tpu_custom_call.1} parent=0
    _
  %s13 = ssub.s32 1, %s11
  %s14 = scalar_select 0, %s13, %s11
  $region1: #{tpu_custom_call.1} parent=0
    #allocation2 [shape = 'u8[8192]{0}', space=vmem, size = 0x2000, scoped, tag = 'input window, operand 0']
    #allocation3 [shape = 's32[2]{0}', space=sflag, size = 0x8, scoped, tag = 'scoped memory for tpu_custom_call.1']
    #allocation4 [shape = 's32[2]{0}', space=sflag, size = 0x8, scoped, tag = 'scoped memory for tpu_custom_call.1']
    #allocation5 [shape = 'u8[8192]{0}', space=vmem, size = 0x2000, scoped, tag = 'input window, operand 1']
    #allocation6 [shape = 's32[2]{0}', space=sflag, size = 0x8, scoped, tag = 'scoped memory for tpu_custom_call.1']
    #allocation7 [shape = 'u8[16384]{0}', space=vmem, size = 0x4000, scoped, tag = 'input window, operand 2, single buffered']
    #allocation8 [shape = 'u8[512]{0}', space=vmem, size = 0x400, scoped, tag = 'input window, operand 3, single buffered']
    #allocation9 [shape = 's32[1]{0}', space=sflag, size = 0x4, scoped, tag = 'scoped memory for tpu_custom_call.1']
    #allocation10 [shape = 'u8[16384]{0}', space=vmem, size = 0x4000, scoped, tag = 'input window, operand 4, single buffered']
    #allocation11 [shape = 'u8[512]{0}', space=vmem, size = 0x400, scoped, tag = 'input window, operand 5, single buffered']
    #allocation12 [shape = 's32[1]{0}', space=sflag, size = 0x4, scoped, tag = 'scoped memory for tpu_custom_call.1']
    #allocation13 [shape = 'u8[512]{0}', space=vmem, size = 0x400, scoped, tag = 'input window, operand 6, single buffered']
    #allocation14 [shape = 'u8[512]{0}', space=vmem, size = 0x400, scoped, tag = 'input window, operand 7, single buffered']
    #allocation15 [shape = 's32[1]{0}', space=sflag, size = 0x4, scoped, tag = 'scoped memory for tpu_custom_call.1']
    #allocation16 [shape = 'u8[32768]{0}', space=vmem, size = 0x8000, scoped, tag = 'output window, operand 0']
    #allocation17 [shape = 'u8[32768]{0}', space=vmem, size = 0x8000, scoped, tag = 'output window, operand 1']
    #allocation18 [shape = 's32[2]{0}', space=sflag, size = 0x8, scoped, tag = 'scoped memory for tpu_custom_call.1']
    %15 = vsyncpa [#allocation3], 0
    %s16 = scalar_lea.sflag [#allocation3], 1
    %17 = vsyncpa %s16, 0
    %18 = vsyncpa [#allocation6], 0
    %s19 = scalar_lea.sflag [#allocation6], 1
    %20 = vsyncpa %s19, 0
    %21 = vsyncpa [#allocation9], 0
    %22 = vsyncpa [#allocation12], 0
    %23 = vsyncpa [#allocation15], 0
    %24 = vsyncpa [#allocation4], 0
    %s25 = scalar_lea.sflag [#allocation4], 1
    %26 = vsyncpa %s25, 0
    %27 = vsyncpa [#allocation18], 0
    %s28 = scalar_lea.sflag [#allocation18], 1
    %29 = vsyncpa %s28, 0
    loop: start=0, step=1, limit=4
    $region2: #{tpu_custom_call.1} parent=1 // loop_pre_header
      _
    $region3: #{tpu_custom_call.1} parent=1 // loop_header
      %s31 = sphi 0, %s35
      %p32 = scmp.ge.s32.totalorder %s31, 4
      %s41 = sphi 0, %s43
      %s44 = sphi 0, %s41
      %s45 = sphi 0, %s44
      %s61 = sphi 0, %s45
      %s67 = sphi 0, %s69
      %s70 = sphi 0, %s67
      %s71 = sphi 0, %s70
      %s87 = sphi 0, %s71
      %s91 = sphi 0, %s91
      %s93 = sphi 0, %s91
      %s94 = sphi 0, %s93
      %s108 = sphi 0, %s94
      %s112 = sphi 0, %s112
      %s114 = sphi 0, %s112
      %s115 = sphi 0, %s114
      %s129 = sphi 0, %s115
      %s133 = sphi 0, %s133
      %s135 = sphi 0, %s133
      %s136 = sphi 0, %s135
      %s150 = sphi 0, %s136
      %s154 = sphi 0, %s154
      %s156 = sphi 0, %s154
      %s157 = sphi 0, %s156
      %s171 = sphi 0, %s157
      %s175 = sphi 0, %s175
      %s177 = sphi 0, %s175
      %s178 = sphi 0, %s177
      %s192 = sphi 0, %s178
      %s196 = sphi 0, %s196
      %s198 = sphi 0, %s196
      %s199 = sphi 0, %s198
      %s213 = sphi 0, %s199
      %s219 = sphi 0, %s221
      %s222 = sphi 0, %s219
      %s223 = sphi 0, %s222
      %s239 = sphi 0, %s223
      %s245 = sphi 0, %s247
      %s248 = sphi 0, %s245
      %s249 = sphi 0, %s248
      %s265 = sphi 0, %s249
    $region4: #{tpu_custom_call.1} parent=1 // loop_header_branch
      %34 = sbr.rel (%p32) target = $region8
    $region5: #{tpu_custom_call.1} parent=1 // loop_body
      %s36 = ssub.s32 %s31, 1
      %s37 = ssub.s32 %s31, 2
      %s38 = sadd.s32 %s31, 1
      %s39 = ssub.s32 %s31, %s38
      %p40 = scmp.eq.s32.totalorder %s39, 0
      %s42 = sadd.s32 %s41, 1
      %s43 = scalar_select %p40, %s41, %s42
      %p46 = pneg %p40
      %p47 = scmp.eq.s32.totalorder %s31, 1
      %p48 = por %p46, %p47
      %p49 = scmp.ne.s32.totalorder %s41, %s44
      %p50 = scmp.eq.s32.totalorder %s31, 0
      %p51 = por %p49, %p50
      %p52 = scmp.ne.s32.totalorder %s41, %s44
      %p53 = scmp.eq.s32.totalorder %s36, 1
      %p54 = por %p52, %p53
      %p55 = scmp.ne.s32.totalorder %s44, %s45
      %p56 = scmp.eq.s32.totalorder %s36, 0
      %p57 = por %p55, %p56
      %p58 = scmp.ne.s32.totalorder %s44, %s45
      %p59 = scmp.eq.s32.totalorder %s37, 1
      %p60 = por %p58, %p59
      %p62 = scmp.ne.s32.totalorder %s45, %s61
      %p63 = scmp.eq.s32.totalorder %s37, 0
      %p64 = por %p62, %p63
      %s65 = ssub.s32 %s31, %s38
      %p66 = scmp.eq.s32.totalorder %s65, 0
      %s68 = sadd.s32 %s67, 1
      %s69 = scalar_select %p66, %s67, %s68
      %p72 = pneg %p66
      %p73 = scmp.eq.s32.totalorder %s31, 1
      %p74 = por %p72, %p73
      %p75 = scmp.ne.s32.totalorder %s67, %s70
      %p76 = scmp.eq.s32.totalorder %s31, 0
      %p77 = por %p75, %p76
      %p78 = scmp.ne.s32.totalorder %s67, %s70
      %p79 = scmp.eq.s32.totalorder %s36, 1
      %p80 = por %p78, %p79
      %p81 = scmp.ne.s32.totalorder %s70, %s71
      %p82 = scmp.eq.s32.totalorder %s36, 0
      %p83 = por %p81, %p82
      %p84 = scmp.ne.s32.totalorder %s70, %s71
      %p85 = scmp.eq.s32.totalorder %s37, 1
      %p86 = por %p84, %p85
      %p88 = scmp.ne.s32.totalorder %s71, %s87
      %p89 = scmp.eq.s32.totalorder %s37, 0
      %p90 = por %p88, %p89
      %s92 = sadd.s32 %s91, 1
      %p95 = scmp.eq.s32.totalorder %s31, 1
      %p96 = scmp.ne.s32.totalorder %s91, %s93
      %p97 = scmp.eq.s32.totalorder %s31, 0
      %p98 = por %p96, %p97
      %p99 = scmp.ne.s32.totalorder %s91, %s93
      %p100 = scmp.eq.s32.totalorder %s36, 1
      %p101 = por %p99, %p100
      %p102 = scmp.ne.s32.totalorder %s93, %s94
      %p103 = scmp.eq.s32.totalorder %s36, 0
      %p104 = por %p102, %p103
      %p105 = scmp.ne.s32.totalorder %s93, %s94
      %p106 = scmp.eq.s32.totalorder %s37, 1
      %p107 = por %p105, %p106
      %p109 = scmp.ne.s32.totalorder %s94, %s108
      %p110 = scmp.eq.s32.totalorder %s37, 0
      %p111 = por %p109, %p110
      %s113 = sadd.s32 %s112, 1
      %p116 = scmp.eq.s32.totalorder %s31, 1
      %p117 = scmp.ne.s32.totalorder %s112, %s114
      %p118 = scmp.eq.s32.totalorder %s31, 0
      %p119 = por %p117, %p118
      %p120 = scmp.ne.s32.totalorder %s112, %s114
      %p121 = scmp.eq.s32.totalorder %s36, 1
      %p122 = por %p120, %p121
      %p123 = scmp.ne.s32.totalorder %s114, %s115
      %p124 = scmp.eq.s32.totalorder %s36, 0
      %p125 = por %p123, %p124
      %p126 = scmp.ne.s32.totalorder %s114, %s115
      %p127 = scmp.eq.s32.totalorder %s37, 1
      %p128 = por %p126, %p127
      %p130 = scmp.ne.s32.totalorder %s115, %s129
      %p131 = scmp.eq.s32.totalorder %s37, 0
      %p132 = por %p130, %p131
      %s134 = sadd.s32 %s133, 1
      %p137 = scmp.eq.s32.totalorder %s31, 1
      %p138 = scmp.ne.s32.totalorder %s133, %s135
      %p139 = scmp.eq.s32.totalorder %s31, 0
      %p140 = por %p138, %p139
      %p141 = scmp.ne.s32.totalorder %s133, %s135
      %p142 = scmp.eq.s32.totalorder %s36, 1
      %p143 = por %p141, %p142
      %p144 = scmp.ne.s32.totalorder %s135, %s136
      %p145 = scmp.eq.s32.totalorder %s36, 0
      %p146 = por %p144, %p145
      %p147 = scmp.ne.s32.totalorder %s135, %s136
      %p148 = scmp.eq.s32.totalorder %s37, 1
      %p149 = por %p147, %p148
      %p151 = scmp.ne.s32.totalorder %s136, %s150
      %p152 = scmp.eq.s32.totalorder %s37, 0
      %p153 = por %p151, %p152
      %s155 = sadd.s32 %s154, 1
      %p158 = scmp.eq.s32.totalorder %s31, 1
      %p159 = scmp.ne.s32.totalorder %s154, %s156
      %p160 = scmp.eq.s32.totalorder %s31, 0
      %p161 = por %p159, %p160
      %p162 = scmp.ne.s32.totalorder %s154, %s156
      %p163 = scmp.eq.s32.totalorder %s36, 1
      %p164 = por %p162, %p163
      %p165 = scmp.ne.s32.totalorder %s156, %s157
      %p166 = scmp.eq.s32.totalorder %s36, 0
      %p167 = por %p165, %p166
      %p168 = scmp.ne.s32.totalorder %s156, %s157
      %p169 = scmp.eq.s32.totalorder %s37, 1
      %p170 = por %p168, %p169
      %p172 = scmp.ne.s32.totalorder %s157, %s171
      %p173 = scmp.eq.s32.totalorder %s37, 0
      %p174 = por %p172, %p173
      %s176 = sadd.s32 %s175, 1
      %p179 = scmp.eq.s32.totalorder %s31, 1
      %p180 = scmp.ne.s32.totalorder %s175, %s177
      %p181 = scmp.eq.s32.totalorder %s31, 0
      %p182 = por %p180, %p181
      %p183 = scmp.ne.s32.totalorder %s175, %s177
      %p184 = scmp.eq.s32.totalorder %s36, 1
      %p185 = por %p183, %p184
      %p186 = scmp.ne.s32.totalorder %s177, %s178
      %p187 = scmp.eq.s32.totalorder %s36, 0
      %p188 = por %p186, %p187
      %p189 = scmp.ne.s32.totalorder %s177, %s178
      %p190 = scmp.eq.s32.totalorder %s37, 1
      %p191 = por %p189, %p190
      %p193 = scmp.ne.s32.totalorder %s178, %s192
      %p194 = scmp.eq.s32.totalorder %s37, 0
      %p195 = por %p193, %p194
      %s197 = sadd.s32 %s196, 1
      %p200 = scmp.eq.s32.totalorder %s31, 1
      %p201 = scmp.ne.s32.totalorder %s196, %s198
      %p202 = scmp.eq.s32.totalorder %s31, 0
      %p203 = por %p201, %p202
      %p204 = scmp.ne.s32.totalorder %s196, %s198
      %p205 = scmp.eq.s32.totalorder %s36, 1
      %p206 = por %p204, %p205
      %p207 = scmp.ne.s32.totalorder %s198, %s199
      %p208 = scmp.eq.s32.totalorder %s36, 0
      %p209 = por %p207, %p208
      %p210 = scmp.ne.s32.totalorder %s198, %s199
      %p211 = scmp.eq.s32.totalorder %s37, 1
      %p212 = por %p210, %p211
      %p214 = scmp.ne.s32.totalorder %s199, %s213
      %p215 = scmp.eq.s32.totalorder %s37, 0
      %p216 = por %p214, %p215
      %s217 = ssub.s32 %s31, %s38
      %p218 = scmp.eq.s32.totalorder %s217, 0
      %s220 = sadd.s32 %s219, 1
      %s221 = scalar_select %p218, %s219, %s220
      %p224 = pneg %p218
      %p225 = scmp.eq.s32.totalorder %s31, 1
      %p226 = por %p224, %p225
      %p227 = scmp.ne.s32.totalorder %s219, %s222
      %p228 = scmp.eq.s32.totalorder %s31, 0
      %p229 = por %p227, %p228
      %p230 = scmp.ne.s32.totalorder %s219, %s222
      %p231 = scmp.eq.s32.totalorder %s36, 1
      %p232 = por %p230, %p231
      %p233 = scmp.ne.s32.totalorder %s222, %s223
      %p234 = scmp.eq.s32.totalorder %s36, 0
      %p235 = por %p233, %p234
      %p236 = scmp.ne.s32.totalorder %s222, %s223
      %p237 = scmp.eq.s32.totalorder %s37, 1
      %p238 = por %p236, %p237
      %p240 = scmp.ne.s32.totalorder %s223, %s239
      %p241 = scmp.eq.s32.totalorder %s37, 0
      %p242 = por %p240, %p241
      %s243 = ssub.s32 %s31, %s38
      %p244 = scmp.eq.s32.totalorder %s243, 0
      %s246 = sadd.s32 %s245, 1
      %s247 = scalar_select %p244, %s245, %s246
      %p250 = pneg %p244
      %p251 = scmp.eq.s32.totalorder %s31, 1
      %p252 = por %p250, %p251
      %p253 = scmp.ne.s32.totalorder %s245, %s248
      %p254 = scmp.eq.s32.totalorder %s31, 0
      %p255 = por %p253, %p254
      %p256 = scmp.ne.s32.totalorder %s245, %s248
      %p257 = scmp.eq.s32.totalorder %s36, 1
      %p258 = por %p256, %p257
      %p259 = scmp.ne.s32.totalorder %s248, %s249
      %p260 = scmp.eq.s32.totalorder %s36, 0
      %p261 = por %p259, %p260
      %p262 = scmp.ne.s32.totalorder %s248, %s249
      %p263 = scmp.eq.s32.totalorder %s37, 1
      %p264 = por %p262, %p263
      %p266 = scmp.ne.s32.totalorder %s249, %s265
      %p267 = scmp.eq.s32.totalorder %s37, 0
      %p268 = por %p266, %p267
      %p269 = scmp.le.s32.totalorder 1, %s31
      %p270 = scmp.lt.s32.totalorder %s31, 3
      %p271 = pnand %p269, %p270
      %p272 = pneg %p271
      // Predicated region
      $region9: #{tpu_custom_call.1} parent=5 // pred_check
        _
      $region10: #{tpu_custom_call.1} parent=5 // pred_check_branch
        %274 = sbr.rel (%p271) target = $region12
      $region11: #{tpu_custom_call.1} parent=5 // pred_region
        %s275 = ssub.s32 %s31, 1
        // Predicated region
        $region13: #{tpu_custom_call.1} parent=11 // pred_check
          %p276 = pneg %p104
        $region14: #{tpu_custom_call.1} parent=11 // pred_check_branch
          %278 = sbr.rel (%p276) target = $region16
        $region15: #{tpu_custom_call.1} parent=11 // pred_region
          %s280 = ssub.s32 512, 512
          %281 = vsyncadd [#allocation6], %s280
          %s282 = sshll.u32 [#allocation7], 4
          %s283 = int_to_ptr.vmem [resolvable:$true] %s282
          %288 = dma.hbm_to_vmem [thread:$0]  %s2, 512, %s283, [#allocation6], 128, 128, 8
        $region16: #{tpu_custom_call.1} parent=11 // pred_fallthru
          _
        // Predicated region
        $region17: #{tpu_custom_call.1} parent=11 // pred_check
          %p289 = pneg %p125
        $region18: #{tpu_custom_call.1} parent=11 // pred_check_branch
          %291 = sbr.rel (%p289) target = $region20
        $region19: #{tpu_custom_call.1} parent=11 // pred_region
          %s293 = ssub.s32 16, 16
          %294 = vsyncadd [#allocation9], %s293
          %s296 = sshll.u32 [#allocation8], 4
          %s297 = int_to_ptr.vmem [resolvable:$true] %s296
          %299 = dma.hbm_to_vmem [thread:$0]  %s3, 16, %s297, [#allocation9]
        $region20: #{tpu_custom_call.1} parent=11 // pred_fallthru
          _
        // Predicated region
        $region21: #{tpu_custom_call.1} parent=11 // pred_check
          %p300 = pneg %p146
        $region22: #{tpu_custom_call.1} parent=11 // pred_check_branch
          %302 = sbr.rel (%p300) target = $region24
        $region23: #{tpu_custom_call.1} parent=11 // pred_region
          %s304 = ssub.s32 512, 512
          %305 = vsyncadd [#allocation9], %s304
          %s306 = sshll.u32 [#allocation10], 4
          %s307 = int_to_ptr.vmem [resolvable:$true] %s306
          %312 = dma.hbm_to_vmem [thread:$0]  %s4, 512, %s307, [#allocation9], 128, 128, 8
        $region24: #{tpu_custom_call.1} parent=11 // pred_fallthru
          _
        // Predicated region
        $region25: #{tpu_custom_call.1} parent=11 // pred_check
          %p313 = pneg %p167
        $region26: #{tpu_custom_call.1} parent=11 // pred_check_branch
          %315 = sbr.rel (%p313) target = $region28
        $region27: #{tpu_custom_call.1} parent=11 // pred_region
          %s317 = ssub.s32 16, 16
          %318 = vsyncadd [#allocation12], %s317
          %s320 = sshll.u32 [#allocation11], 4
          %s321 = int_to_ptr.vmem [resolvable:$true] %s320
          %323 = dma.hbm_to_vmem [thread:$0]  %s5, 16, %s321, [#allocation12]
        $region28: #{tpu_custom_call.1} parent=11 // pred_fallthru
          _
        // Predicated region
        $region29: #{tpu_custom_call.1} parent=11 // pred_check
          %p324 = pneg %p188
        $region30: #{tpu_custom_call.1} parent=11 // pred_check_branch
          %326 = sbr.rel (%p324) target = $region32
        $region31: #{tpu_custom_call.1} parent=11 // pred_region
          %s328 = ssub.s32 16, 16
          %329 = vsyncadd [#allocation12], %s328
          %s331 = sshll.u32 [#allocation13], 4
          %s332 = int_to_ptr.vmem [resolvable:$true] %s331
          %334 = dma.hbm_to_vmem [thread:$0]  %s6, 16, %s332, [#allocation12]
        $region32: #{tpu_custom_call.1} parent=11 // pred_fallthru
          _
        // Predicated region
        $region33: #{tpu_custom_call.1} parent=11 // pred_check
          %p335 = pneg %p209
        $region34: #{tpu_custom_call.1} parent=11 // pred_check_branch
          %337 = sbr.rel (%p335) target = $region36
        $region35: #{tpu_custom_call.1} parent=11 // pred_region
          %s339 = ssub.s32 16, 16
          %340 = vsyncadd [#allocation15], %s339
          %s342 = sshll.u32 [#allocation14], 4
          %s343 = int_to_ptr.vmem [resolvable:$true] %s342
          %345 = dma.hbm_to_vmem [thread:$0]  %s7, 16, %s343, [#allocation15]
        $region36: #{tpu_custom_call.1} parent=11 // pred_fallthru
          _
      $region12: #{tpu_custom_call.1} parent=5 // pred_fallthru
        _
      %p346 = scmp.lt.s32.totalorder %s31, 2
      // Predicated region
      $region37: #{tpu_custom_call.1} parent=5 // pred_check
        %p347 = pneg %p346
      $region38: #{tpu_custom_call.1} parent=5 // pred_check_branch
        %349 = sbr.rel (%p347) target = $region40
      $region39: #{tpu_custom_call.1} parent=5 // pred_region
        // Predicated region
        $region41: #{tpu_custom_call.1} parent=39 // pred_check
          %p350 = pneg %p51
        $region42: #{tpu_custom_call.1} parent=39 // pred_check_branch
          %352 = sbr.rel (%p350) target = $region44
        $region43: #{tpu_custom_call.1} parent=39 // pred_region
          %s353 = sand.u32 %s41, 1
          %s354 = scalar_lea.sflag [#allocation3], %s353
          %s355 = sand.u32 %s41, 1
          %s356 = smul.addr %s355, 8
          %s357 = scalar_lea.vmem [#allocation2], %s356
          %s359 = ssub.s32 128, 128
          %360 = vsyncadd %s354, %s359
          %s361 = smul.addr %s31, 128
          %s362 = scalar_lea.hbm %s0, %s361
          %s364 = sshll.u32 %s357, 4
          %s365 = int_to_ptr.vmem [resolvable:$true] %s364
          %367 = dma.hbm_to_vmem [thread:$0]  %s362, 128, %s365, %s354
        $region44: #{tpu_custom_call.1} parent=39 // pred_fallthru
          _
        // Predicated region
        $region45: #{tpu_custom_call.1} parent=39 // pred_check
          %p368 = pneg %p77
        $region46: #{tpu_custom_call.1} parent=39 // pred_check_branch
          %370 = sbr.rel (%p368) target = $region48
        $region47: #{tpu_custom_call.1} parent=39 // pred_region
          %s371 = sand.u32 %s31, 1
          %s372 = scalar_lea.sflag [#allocation6], %s371
          %s373 = sand.u32 %s67, 1
          %s374 = smul.addr %s373, 8
          %s375 = scalar_lea.vmem [#allocation5], %s374
          %s377 = ssub.s32 128, 128
          %378 = vsyncadd %s372, %s377
          %s379 = smul.addr %s31, 128
          %s380 = scalar_lea.hbm %s1, %s379
          %s382 = sshll.u32 %s375, 4
          %s383 = int_to_ptr.vmem [resolvable:$true] %s382
          %385 = dma.hbm_to_vmem [thread:$0]  %s380, 128, %s383, %s372
        $region48: #{tpu_custom_call.1} parent=39 // pred_fallthru
          _
      $region40: #{tpu_custom_call.1} parent=5 // pred_fallthru
        _
      %p386 = scmp.le.s32.totalorder 1, %s31
      %p387 = scmp.lt.s32.totalorder %s31, 3
      %p388 = pnand %p386, %p387
      %p389 = pneg %p388
      // Predicated region
      $region49: #{tpu_custom_call.1} parent=5 // pred_check
        _
      $region50: #{tpu_custom_call.1} parent=5 // pred_check_branch
        %391 = sbr.rel (%p388) target = $region52
      $region51: #{tpu_custom_call.1} parent=5 // pred_region
        %s392 = ssub.s32 %s31, 1
        %s393 = sand.u32 %s44, 1
        %s394 = scalar_lea.sflag [#allocation3], %s393
        %s395 = sand.u32 %s44, 1
        %s396 = smul.addr %s395, 8
        %s397 = scalar_lea.vmem [#allocation2], %s396
        // Predicated region
        $region53: #{tpu_custom_call.1} parent=51 // pred_check
          %p398 = pneg %p57
        $region54: #{tpu_custom_call.1} parent=51 // pred_check_branch
          %400 = sbr.rel (%p398) target = $region56
        $region55: #{tpu_custom_call.1} parent=51 // pred_region
          %401 = dma.done %s394, 128
        $region56: #{tpu_custom_call.1} parent=51 // pred_fallthru
          _
        %s402 = sand.u32 %s36, 1
        %s403 = scalar_lea.sflag [#allocation6], %s402
        %s404 = sand.u32 %s70, 1
        %s405 = smul.addr %s404, 8
        %s406 = scalar_lea.vmem [#allocation5], %s405
        // Predicated region
        $region57: #{tpu_custom_call.1} parent=51 // pred_check
          %p407 = pneg %p83
        $region58: #{tpu_custom_call.1} parent=51 // pred_check_branch
          %409 = sbr.rel (%p407) target = $region60
        $region59: #{tpu_custom_call.1} parent=51 // pred_region
          %410 = dma.done %s403, 128
        $region60: #{tpu_custom_call.1} parent=51 // pred_fallthru
          _
        // Predicated region
        $region61: #{tpu_custom_call.1} parent=51 // pred_check
          %p411 = pneg %p104
        $region62: #{tpu_custom_call.1} parent=51 // pred_check_branch
          %413 = sbr.rel (%p411) target = $region64
        $region63: #{tpu_custom_call.1} parent=51 // pred_region
          %414 = dma.done [#allocation6], 512
        $region64: #{tpu_custom_call.1} parent=51 // pred_fallthru
          _
        // Predicated region
        $region65: #{tpu_custom_call.1} parent=51 // pred_check
          %p415 = pneg %p125
        $region66: #{tpu_custom_call.1} parent=51 // pred_check_branch
          %417 = sbr.rel (%p415) target = $region68
        $region67: #{tpu_custom_call.1} parent=51 // pred_region
          %418 = dma.done [#allocation9], 16
        $region68: #{tpu_custom_call.1} parent=51 // pred_fallthru
          _
        // Predicated region
        $region69: #{tpu_custom_call.1} parent=51 // pred_check
          %p419 = pneg %p146
        $region70: #{tpu_custom_call.1} parent=51 // pred_check_branch
          %421 = sbr.rel (%p419) target = $region72
        $region71: #{tpu_custom_call.1} parent=51 // pred_region
          %422 = dma.done [#allocation9], 512
        $region72: #{tpu_custom_call.1} parent=51 // pred_fallthru
          _
        // Predicated region
        $region73: #{tpu_custom_call.1} parent=51 // pred_check
          %p423 = pneg %p167
        $region74: #{tpu_custom_call.1} parent=51 // pred_check_branch
          %425 = sbr.rel (%p423) target = $region76
        $region75: #{tpu_custom_call.1} parent=51 // pred_region
          %426 = dma.done [#allocation12], 16
        $region76: #{tpu_custom_call.1} parent=51 // pred_fallthru
          _
        // Predicated region
        $region77: #{tpu_custom_call.1} parent=51 // pred_check
          %p427 = pneg %p188
        $region78: #{tpu_custom_call.1} parent=51 // pred_check_branch
          %429 = sbr.rel (%p427) target = $region80
        $region79: #{tpu_custom_call.1} parent=51 // pred_region
          %430 = dma.done [#allocation12], 16
        $region80: #{tpu_custom_call.1} parent=51 // pred_fallthru
          _
        // Predicated region
        $region81: #{tpu_custom_call.1} parent=51 // pred_check
          %p431 = pneg %p209
        $region82: #{tpu_custom_call.1} parent=51 // pred_check_branch
          %433 = sbr.rel (%p431) target = $region84
        $region83: #{tpu_custom_call.1} parent=51 // pred_region
          %434 = dma.done [#allocation15], 16
        $region84: #{tpu_custom_call.1} parent=51 // pred_fallthru
          _
        %s435 = sand.u32 %s44, 1
        %s436 = scalar_lea.sflag [#allocation3], %s435
        %s437 = sand.u32 %s44, 1
        %s438 = smul.addr %s437, 8
        %s439 = scalar_lea.vmem [#allocation2], %s438
        %p440 = pneg %p57
        %p441 = pneg %p54
        %s442 = sand.u32 %s36, 1
        %s443 = scalar_lea.sflag [#allocation6], %s442
        %s444 = sand.u32 %s70, 1
        %s445 = smul.addr %s444, 8
        %s446 = scalar_lea.vmem [#allocation5], %s445
        %p447 = pneg %p83
        %p448 = pneg %p80
        %p449 = pneg %p104
        %p450 = pneg %p101
        %p451 = pneg %p125
        %p452 = pneg %p122
        %p453 = pneg %p146
        %p454 = pneg %p143
        %p455 = pneg %p167
        %p456 = pneg %p164
        %p457 = pneg %p188
        %p458 = pneg %p185
        %p459 = pneg %p209
        %p460 = pneg %p206
        %p461 = pneg %p235
        %p462 = pneg %p232
        %s463 = sand.u32 %s222, 1
        %s464 = scalar_lea.sflag [#allocation4], %s463
        %s465 = sand.u32 %s222, 1
        %s466 = smul.addr %s465, 32
        %s467 = scalar_lea.vmem [#allocation16], %s466
        %p468 = pneg %p261
        %p469 = pneg %p258
        %s470 = sand.u32 %s248, 1
        %s471 = scalar_lea.sflag [#allocation18], %s470
        %s472 = sand.u32 %s248, 1
        %s473 = smul.addr %s472, 32
        %s474 = scalar_lea.vmem [#allocation17], %s473
        %v475 = vld [vmem:[%s397] sm:$0xff]
        %v476 = vld [vmem:[%s406] sm:$0xff]
        %v477 = vld [vmem:[#allocation7] sm:$0xff]
        %v478 = vld [vmem:[#allocation7 + $0x8] sm:$0xff]
        %v479 = vld [vmem:[#allocation7 + $0x10] sm:$0xff]
        %v480 = vld [vmem:[#allocation7 + $0x18] sm:$0xff]
        %v481 = vld [vmem:[#allocation8] sm:$0x1]
        %v483 = vlaneseq
        %v484 = vshrl.u32 %v483, 7
        %v485 = vsub.s32 0, %v484
        %v486 = vrot.slane %v481, %v485
        %vm488 = vcmask 261120
        %v490 = vsel %vm488, %v475, 0
        %492 = vmatprep.subr.mxu0 0.0
        %493 = vmatpush1.msra.mxu0 %v477
        %494 = vmatprep.subr.mxu0 0.0
        %495 = vmatpush1.msra.mxu0 %v478
        %496 = vmatprep.subr.mxu0 0.0
        %497 = vmatpush1.msra.mxu0 %v479
        %498 = vmatprep.subr.mxu0 0.0
        %499 = vmatpush1.msra.mxu0 %v480
        %500 = vmatprep.subr.mxu0 0.0
        %501 = vmatpush1.msra.mxu0 0.0
        %502 = vmatprep.subr.mxu0 0.0
        %503 = vmatpush1.msra.mxu0 0.0
        %504 = vmatprep.subr.mxu0 0.0
        %505 = vmatpush1.msra.mxu0 0.0
        %506 = vmatprep.subr.mxu0 0.0
        %507 = vmatpush1.msra.mxu0 0.0
        %508 = vmatprep.subr.mxu0 0.0
        %509 = vmatpush1.msra.mxu0 0.0
        %510 = vmatprep.subr.mxu0 0.0
        %511 = vmatpush1.msra.mxu0 0.0
        %512 = vmatprep.subr.mxu0 0.0
        %513 = vmatpush1.msra.mxu0 0.0
        %514 = vmatprep.subr.mxu0 0.0
        %515 = vmatpush1.msra.mxu0 0.0
        %516 = vmatprep.subr.mxu0 0.0
        %517 = vmatpush1.msra.mxu0 0.0
        %518 = vmatprep.subr.mxu0 0.0
        %519 = vmatpush1.msra.mxu0 0.0
        %520 = vmatprep.subr.mxu0 0.0
        %521 = vmatpush1.msra.mxu0 0.0
        %522 = vmatprep.subr.mxu0 0.0
        %523 = vmatpush1.msra.mxu0 0.0
        %524 = vmatprep.subr.mxu0 0.0
        %525 = vmatpush1.msra.mxu0 0.0
        %526 = vmatprep.subr.mxu0 0.0
        %527 = vmatpush1.msra.mxu0 0.0
        %528 = vmatprep.subr.mxu0 0.0
        %529 = vmatpush1.msra.mxu0 0.0
        %530 = vmatprep.subr.mxu0 0.0
        %531 = vmatpush1.msra.mxu0 0.0
        %532 = vmatprep.subr.mxu0 0.0
        %533 = vmatpush1.msra.mxu0 0.0
        %534 = vmatprep.subr.mxu0 0.0
        %535 = vmatpush1.msra.mxu0 0.0
        %536 = vmatprep.subr.mxu0 0.0
        %537 = vmatpush1.msra.mxu0 0.0
        %538 = vmatprep.subr.mxu0 0.0
        %539 = vmatpush1.msra.mxu0 0.0
        %540 = vmatprep.subr.mxu0 0.0
        %541 = vmatpush1.msra.mxu0 0.0
        %542 = vmatprep.subr.mxu0 0.0
        %543 = vmatpush1.msra.mxu0 0.0
        %544 = vmatprep.subr.mxu0 0.0
        %545 = vmatpush1.msra.mxu0 0.0
        %546 = vmatprep.subr.mxu0 0.0
        %547 = vmatpush1.msra.mxu0 0.0
        %548 = vmatprep.subr.mxu0 0.0
        %549 = vmatpush1.msra.mxu0 0.0
        %550 = vmatprep.subr.mxu0 0.0
        %551 = vmatpush1.msra.mxu0 0.0
        %552 = vmatprep.subr.mxu0 0.0
        %553 = vmatpush1.msra.mxu0 0.0
        %554 = vmatprep.subr.mxu0 0.0
        %555 = vmatpush1.msra.mxu0 0.0
        %556 = vmatprep.mubr.f32.mxu0 0.0
        %557 = vmatmul.mubr.f32.gmra.mrb[0].mxu0 %v490
        %v558 = vpop.f32.mrb[0].mxu0
        %v559 = vadd.f32 %v486, %v558
        %v560 = vpop.f32.mrb[0].mxu0
        %561 = vdwg.mxu0
        %v562 = vld [vmem:[#allocation10] sm:$0xff]
        %v563 = vld [vmem:[#allocation10 + $0x8] sm:$0xff]
        %v564 = vld [vmem:[#allocation10 + $0x10] sm:$0xff]
        %v565 = vld [vmem:[#allocation10 + $0x18] sm:$0xff]
        %v566 = vld [vmem:[#allocation11] sm:$0x1]
        %v568 = vlaneseq
        %v569 = vshrl.u32 %v568, 7
        %v570 = vsub.s32 0, %v569
        %v571 = vrot.slane %v566, %v570
        %v574 = vsel %vm488, %v476, 0
        %576 = vmatprep.subr.mxu0 0.0
        %577 = vmatpush1.msra.mxu0 %v562
        %578 = vmatprep.subr.mxu0 0.0
        %579 = vmatpush1.msra.mxu0 %v563
        %580 = vmatprep.subr.mxu0 0.0
        %581 = vmatpush1.msra.mxu0 %v564
        %582 = vmatprep.subr.mxu0 0.0
        %583 = vmatpush1.msra.mxu0 %v565
        %584 = vmatprep.subr.mxu0 0.0
        %585 = vmatpush1.msra.mxu0 0.0
        %586 = vmatprep.subr.mxu0 0.0
        %587 = vmatpush1.msra.mxu0 0.0
        %588 = vmatprep.subr.mxu0 0.0
        %589 = vmatpush1.msra.mxu0 0.0
        %590 = vmatprep.subr.mxu0 0.0
        %591 = vmatpush1.msra.mxu0 0.0
        %592 = vmatprep.subr.mxu0 0.0
        %593 = vmatpush1.msra.mxu0 0.0
        %594 = vmatprep.subr.mxu0 0.0
        %595 = vmatpush1.msra.mxu0 0.0
        %596 = vmatprep.subr.mxu0 0.0
        %597 = vmatpush1.msra.mxu0 0.0
        %598 = vmatprep.subr.mxu0 0.0
        %599 = vmatpush1.msra.mxu0 0.0
        %600 = vmatprep.subr.mxu0 0.0
        %601 = vmatpush1.msra.mxu0 0.0
        %602 = vmatprep.subr.mxu0 0.0
        %603 = vmatpush1.msra.mxu0 0.0
        %604 = vmatprep.subr.mxu0 0.0
        %605 = vmatpush1.msra.mxu0 0.0
        %606 = vmatprep.subr.mxu0 0.0
        %607 = vmatpush1.msra.mxu0 0.0
        %608 = vmatprep.subr.mxu0 0.0
        %609 = vmatpush1.msra.mxu0 0.0
        %610 = vmatprep.subr.mxu0 0.0
        %611 = vmatpush1.msra.mxu0 0.0
        %612 = vmatprep.subr.mxu0 0.0
        %613 = vmatpush1.msra.mxu0 0.0
        %614 = vmatprep.subr.mxu0 0.0
        %615 = vmatpush1.msra.mxu0 0.0
        %616 = vmatprep.subr.mxu0 0.0
        %617 = vmatpush1.msra.mxu0 0.0
        %618 = vmatprep.subr.mxu0 0.0
        %619 = vmatpush1.msra.mxu0 0.0
        %620 = vmatprep.subr.mxu0 0.0
        %621 = vmatpush1.msra.mxu0 0.0
        %622 = vmatprep.subr.mxu0 0.0
        %623 = vmatpush1.msra.mxu0 0.0
        %624 = vmatprep.subr.mxu0 0.0
        %625 = vmatpush1.msra.mxu0 0.0
        %626 = vmatprep.subr.mxu0 0.0
        %627 = vmatpush1.msra.mxu0 0.0
        %628 = vmatprep.subr.mxu0 0.0
        %629 = vmatpush1.msra.mxu0 0.0
        %630 = vmatprep.subr.mxu0 0.0
        %631 = vmatpush1.msra.mxu0 0.0
        %632 = vmatprep.subr.mxu0 0.0
        %633 = vmatpush1.msra.mxu0 0.0
        %634 = vmatprep.subr.mxu0 0.0
        %635 = vmatpush1.msra.mxu0 0.0
        %636 = vmatprep.subr.mxu0 0.0
        %637 = vmatpush1.msra.mxu0 0.0
        %638 = vmatprep.subr.mxu0 0.0
        %639 = vmatpush1.msra.mxu0 0.0
        %640 = vmatprep.mubr.f32.mxu0 0.0
        %641 = vmatmul.mubr.f32.gmra.mrb[0].mxu0 %v574
        %v642 = vpop.f32.mrb[0].mxu0
        %v643 = vadd.f32 %v571, %v642
        %v644 = vpop.f32.mrb[0].mxu0
        %645 = vdwg.mxu0
        %646 = vxpose.xlu0.b32.start [1/16] %v559, 128
        %647 = vxpose.xlu0.b32.cont [2/16] 0.0, 128
        %648 = vxpose.xlu0.b32.cont [3/16] 0.0, 128
        %649 = vxpose.xlu0.b32.cont [4/16] 0.0, 128
        %650 = vxpose.xlu0.b32.cont [5/16] 0.0, 128
        %651 = vxpose.xlu0.b32.cont [6/16] 0.0, 128
        %652 = vxpose.xlu0.b32.cont [7/16] 0.0, 128
        %653 = vxpose.xlu0.b32.cont [8/16] 0.0, 128
        %654 = vxpose.xlu0.b32.cont [9/16] 0.0, 128
        %655 = vxpose.xlu0.b32.cont [10/16] 0.0, 128
        %656 = vxpose.xlu0.b32.cont [11/16] 0.0, 128
        %657 = vxpose.xlu0.b32.cont [12/16] 0.0, 128
        %658 = vxpose.xlu0.b32.cont [13/16] 0.0, 128
        %659 = vxpose.xlu0.b32.cont [14/16] 0.0, 128
        %660 = vxpose.xlu0.b32.cont [15/16] 0.0, 128
        %661 = vxpose.xlu0.b32.end [16/16] 0.0, 128
        %v662 = vpop.trf.xlu0
        %v663 = vpop.trf.xlu0
        %v664 = vpop.trf.xlu0
        %v665 = vpop.trf.xlu0
        %v666 = vpop.trf.xlu0
        %v667 = vpop.trf.xlu0
        %v668 = vpop.trf.xlu0
        %v669 = vpop.trf.xlu0
        %v670 = vpop.trf.xlu0
        %v671 = vpop.trf.xlu0
        %v672 = vpop.trf.xlu0
        %v673 = vpop.trf.xlu0
        %v674 = vpop.trf.xlu0
        %v675 = vpop.trf.xlu0
        %v676 = vpop.trf.xlu0
        %v677 = vpop.trf.xlu0
        %vm678 = vcmask 64512
        %679 = vst.msk [vmem:[%s467] sm:$0xff] %vm678, %v662
        %680 = vst.msk [vmem:[%s474] sm:$0xff] %vm678, %v643
        %682 = vrot.lane.b32.xlu0 %v559, 120
        %v683 = vpop.permute.xlu0 %682
        %685 = vxpose.xlu0.b32.start [1/16] %v683, 128
        %686 = vxpose.xlu0.b32.cont [2/16] 0.0, 128
        %687 = vxpose.xlu0.b32.cont [3/16] 0.0, 128
        %688 = vxpose.xlu0.b32.cont [4/16] 0.0, 128
        %689 = vxpose.xlu0.b32.cont [5/16] 0.0, 128
        %690 = vxpose.xlu0.b32.cont [6/16] 0.0, 128
        %691 = vxpose.xlu0.b32.cont [7/16] 0.0, 128
        %692 = vxpose.xlu0.b32.cont [8/16] 0.0, 128
        %693 = vxpose.xlu0.b32.cont [9/16] 0.0, 128
        %694 = vxpose.xlu0.b32.cont [10/16] 0.0, 128
        %695 = vxpose.xlu0.b32.cont [11/16] 0.0, 128
        %696 = vxpose.xlu0.b32.cont [12/16] 0.0, 128
        %697 = vxpose.xlu0.b32.cont [13/16] 0.0, 128
        %698 = vxpose.xlu0.b32.cont [14/16] 0.0, 128
        %699 = vxpose.xlu0.b32.cont [15/16] 0.0, 128
        %700 = vxpose.xlu0.b32.end [16/16] 0.0, 128
        %v701 = vpop.trf.xlu0
        %v702 = vpop.trf.xlu0
        %v703 = vpop.trf.xlu0
        %v704 = vpop.trf.xlu0
        %v705 = vpop.trf.xlu0
        %v706 = vpop.trf.xlu0
        %v707 = vpop.trf.xlu0
        %v708 = vpop.trf.xlu0
        %v709 = vpop.trf.xlu0
        %v710 = vpop.trf.xlu0
        %v711 = vpop.trf.xlu0
        %v712 = vpop.trf.xlu0
        %v713 = vpop.trf.xlu0
        %v714 = vpop.trf.xlu0
        %v715 = vpop.trf.xlu0
        %v716 = vpop.trf.xlu0
        %s717 = scalar_lea.vmem %s467, 8 [#allocation16]
        %718 = vst.msk [vmem:[%s717] sm:$0xff] %vm678, %v701
        %720 = vrot.lane.b32.xlu0 %v643, 120
        %v721 = vpop.permute.xlu0 %720
        %s723 = scalar_lea.vmem %s474, 8 [#allocation17]
        %724 = vst.msk [vmem:[%s723] sm:$0xff] %vm678, %v721
        %725 = vrot.lane.b32.xlu0 %v559, 112
        %v726 = vpop.permute.xlu0 %725
        %728 = vxpose.xlu0.b32.start [1/16] %v726, 128
        %729 = vxpose.xlu0.b32.cont [2/16] 0.0, 128
        %730 = vxpose.xlu0.b32.cont [3/16] 0.0, 128
        %731 = vxpose.xlu0.b32.cont [4/16] 0.0, 128
        %732 = vxpose.xlu0.b32.cont [5/16] 0.0, 128
        %733 = vxpose.xlu0.b32.cont [6/16] 0.0, 128
        %734 = vxpose.xlu0.b32.cont [7/16] 0.0, 128
        %735 = vxpose.xlu0.b32.cont [8/16] 0.0, 128
        %736 = vxpose.xlu0.b32.cont [9/16] 0.0, 128
        %737 = vxpose.xlu0.b32.cont [10/16] 0.0, 128
        %738 = vxpose.xlu0.b32.cont [11/16] 0.0, 128
        %739 = vxpose.xlu0.b32.cont [12/16] 0.0, 128
        %740 = vxpose.xlu0.b32.cont [13/16] 0.0, 128
        %741 = vxpose.xlu0.b32.cont [14/16] 0.0, 128
        %742 = vxpose.xlu0.b32.cont [15/16] 0.0, 128
        %743 = vxpose.xlu0.b32.end [16/16] 0.0, 128
        %v744 = vpop.trf.xlu0
        %v745 = vpop.trf.xlu0
        %v746 = vpop.trf.xlu0
        %v747 = vpop.trf.xlu0
        %v748 = vpop.trf.xlu0
        %v749 = vpop.trf.xlu0
        %v750 = vpop.trf.xlu0
        %v751 = vpop.trf.xlu0
        %v752 = vpop.trf.xlu0
        %v753 = vpop.trf.xlu0
        %v754 = vpop.trf.xlu0
        %v755 = vpop.trf.xlu0
        %v756 = vpop.trf.xlu0
        %v757 = vpop.trf.xlu0
        %v758 = vpop.trf.xlu0
        %v759 = vpop.trf.xlu0
        %s760 = scalar_lea.vmem %s467, 16 [#allocation16]
        %761 = vst.msk [vmem:[%s760] sm:$0xff] %vm678, %v744
        %762 = vrot.lane.b32.xlu0 %v643, 112
        %v763 = vpop.permute.xlu0 %762
        %s765 = scalar_lea.vmem %s474, 16 [#allocation17]
        %766 = vst.msk [vmem:[%s765] sm:$0xff] %vm678, %v763
        %767 = vrot.lane.b32.xlu0 %v559, 104
        %v768 = vpop.permute.xlu0 %767
        %770 = vxpose.xlu0.b32.start [1/16] %v768, 128
        %771 = vxpose.xlu0.b32.cont [2/16] 0.0, 128
        %772 = vxpose.xlu0.b32.cont [3/16] 0.0, 128
        %773 = vxpose.xlu0.b32.cont [4/16] 0.0, 128
        %774 = vxpose.xlu0.b32.cont [5/16] 0.0, 128
        %775 = vxpose.xlu0.b32.cont [6/16] 0.0, 128
        %776 = vxpose.xlu0.b32.cont [7/16] 0.0, 128
        %777 = vxpose.xlu0.b32.cont [8/16] 0.0, 128
        %778 = vxpose.xlu0.b32.cont [9/16] 0.0, 128
        %779 = vxpose.xlu0.b32.cont [10/16] 0.0, 128
        %780 = vxpose.xlu0.b32.cont [11/16] 0.0, 128
        %781 = vxpose.xlu0.b32.cont [12/16] 0.0, 128
        %782 = vxpose.xlu0.b32.cont [13/16] 0.0, 128
        %783 = vxpose.xlu0.b32.cont [14/16] 0.0, 128
        %784 = vxpose.xlu0.b32.cont [15/16] 0.0, 128
        %785 = vxpose.xlu0.b32.end [16/16] 0.0, 128
        %v786 = vpop.trf.xlu0
        %v787 = vpop.trf.xlu0
        %v788 = vpop.trf.xlu0
        %v789 = vpop.trf.xlu0
        %v790 = vpop.trf.xlu0
        %v791 = vpop.trf.xlu0
        %v792 = vpop.trf.xlu0
        %v793 = vpop.trf.xlu0
        %v794 = vpop.trf.xlu0
        %v795 = vpop.trf.xlu0
        %v796 = vpop.trf.xlu0
        %v797 = vpop.trf.xlu0
        %v798 = vpop.trf.xlu0
        %v799 = vpop.trf.xlu0
        %v800 = vpop.trf.xlu0
        %v801 = vpop.trf.xlu0
        %s802 = scalar_lea.vmem %s467, 24 [#allocation16]
        %803 = vst.msk [vmem:[%s802] sm:$0xff] %vm678, %v786
        %804 = vrot.lane.b32.xlu0 %v643, 104
        %v805 = vpop.permute.xlu0 %804
        %s807 = scalar_lea.vmem %s474, 24 [#allocation17]
        %808 = vst.msk [vmem:[%s807] sm:$0xff] %vm678, %v805
        %s809 = sand.u32 %s222, 1
        %s810 = scalar_lea.sflag [#allocation4], %s809
        %s811 = sand.u32 %s222, 1
        %s812 = smul.addr %s811, 32
        %s813 = scalar_lea.vmem [#allocation16], %s812
        %s814 = sand.u32 %s248, 1
        %s815 = scalar_lea.sflag [#allocation18], %s814
        %s816 = sand.u32 %s248, 1
        %s817 = smul.addr %s816, 32
        %s818 = scalar_lea.vmem [#allocation17], %s817
        // Predicated region
        $region85: #{tpu_custom_call.1} parent=51 // pred_check
          %p819 = pneg %p232
        $region86: #{tpu_custom_call.1} parent=51 // pred_check_branch
          %821 = sbr.rel (%p819) target = $region88
        $region87: #{tpu_custom_call.1} parent=51 // pred_region
          %s823 = ssub.s32 512, 512
          %824 = vsyncadd %s810, %s823
          %s825 = smul.addr %s36, 4
          %s826 = smul.addr %s825, 128
          %s827 = scalar_lea.hbm %s8, %s826
          %s828 = sshll.u32 %s813, 4
          %s829 = int_to_ptr.vmem [resolvable:$true] %s828
          %834 = dma.vmem_to_hbm [thread:$0]  %s829, 512, %s827, %s810, 128, 128, 8
        $region88: #{tpu_custom_call.1} parent=51 // pred_fallthru
          _
        // Predicated region
        $region89: #{tpu_custom_call.1} parent=51 // pred_check
          %p835 = pneg %p258
        $region90: #{tpu_custom_call.1} parent=51 // pred_check_branch
          %837 = sbr.rel (%p835) target = $region92
        $region91: #{tpu_custom_call.1} parent=51 // pred_region
          %s839 = ssub.s32 512, 512
          %840 = vsyncadd %s815, %s839
          %s841 = smul.addr %s36, 4
          %s842 = smul.addr %s841, 128
          %s843 = scalar_lea.hbm %s9, %s842
          %s844 = sshll.u32 %s818, 4
          %s845 = int_to_ptr.vmem [resolvable:$true] %s844
          %850 = dma.vmem_to_hbm [thread:$0]  %s845, 512, %s843, %s815, 128, 128, 8
        $region92: #{tpu_custom_call.1} parent=51 // pred_fallthru
          _
      $region52: #{tpu_custom_call.1} parent=5 // pred_fallthru
        _
      %p851 = scmp.le.s32.totalorder 2, %s31
      // Predicated region
      $region93: #{tpu_custom_call.1} parent=5 // pred_check
        %p852 = pneg %p851
      $region94: #{tpu_custom_call.1} parent=5 // pred_check_branch
        %854 = sbr.rel (%p852) target = $region96
      $region95: #{tpu_custom_call.1} parent=5 // pred_region
        %s855 = ssub.s32 %s31, 2
        // Predicated region
        $region97: #{tpu_custom_call.1} parent=95 // pred_check
          %p856 = pneg %p238
        $region98: #{tpu_custom_call.1} parent=95 // pred_check_branch
          %858 = sbr.rel (%p856) target = $region100
        $region99: #{tpu_custom_call.1} parent=95 // pred_region
          %s859 = sand.u32 %s223, 1
          %s860 = scalar_lea.sflag [#allocation4], %s859
          %s861 = sand.u32 %s223, 1
          %s862 = smul.addr %s861, 32
          %s863 = scalar_lea.vmem [#allocation16], %s862
          %864 = dma.done %s860, 512
        $region100: #{tpu_custom_call.1} parent=95 // pred_fallthru
          _
        // Predicated region
        $region101: #{tpu_custom_call.1} parent=95 // pred_check
          %p865 = pneg %p264
        $region102: #{tpu_custom_call.1} parent=95 // pred_check_branch
          %867 = sbr.rel (%p865) target = $region104
        $region103: #{tpu_custom_call.1} parent=95 // pred_region
          %s868 = sand.u32 %s249, 1
          %s869 = scalar_lea.sflag [#allocation18], %s868
          %s870 = sand.u32 %s249, 1
          %s871 = smul.addr %s870, 32
          %s872 = scalar_lea.vmem [#allocation17], %s871
          %873 = dma.done %s869, 512
        $region104: #{tpu_custom_call.1} parent=95 // pred_fallthru
          _
      $region96: #{tpu_custom_call.1} parent=5 // pred_fallthru
        _
    $region6: #{tpu_custom_call.1} parent=1 // loop_footer
      %s35 = sadd.s32 1, %s31
    $region7: #{tpu_custom_call.1} parent=1 // loop_footer_branch
      %30 = sbr.rel target = $region3
    $region8: #{tpu_custom_call.1} parent=1 // loop_exit
      _
    %874 = vsyncpa [#allocation3], 1
    %s875 = scalar_lea.sflag [#allocation3], 1
    %876 = vsyncpa %s875, 1
    %877 = vsyncpa [#allocation6], 1
    %s878 = scalar_lea.sflag [#allocation6], 1
    %879 = vsyncpa %s878, 1
    %880 = vsyncpa [#allocation9], 1
    %881 = vsyncpa [#allocation12], 1
    %882 = vsyncpa [#allocation15], 1
    %883 = vsyncpa [#allocation4], 1
    %s884 = scalar_lea.sflag [#allocation4], 1
    %885 = vsyncpa %s884, 1
    %886 = vsyncpa [#allocation18], 1
    %s887 = scalar_lea.sflag [#allocation18], 1
    %888 = vsyncpa %s887, 1

</llo_original>
